<compile_context>
chip_gen: v6e
topology: v6e:2x2x1
jax: 0.10.0
libtpu: 0.0.40
codegen_flags: <defaults>
</compile_context>

<pallas_src>
import math

import jax
import jax.numpy as jnp
import numpy as np
from jax.experimental import pallas as pl
from jax.experimental.pallas import tpu as pltpu

_HALF_LOG_2PI = 0.5 * math.log(2.0 * math.pi)


def _leaf_matmul_kernel(x_ref, wa_ref, wb_ref, wk_ref, out_ref, acc_ref):
    # x_ref  : [tk, tb]  transposed inputs (features on sublanes, batch on lanes)
    # w*_ref : [tm, tk]  dense per-feature coefficient tiles (pad mask folded in)
    # out_ref: [tm, tb]  per-(region,channel) log-likelihoods, batch on lanes
    # acc_ref: [tm, tb]  f32 VMEM accumulator over the feature (k) axis
    @pl.when(pl.program_id(2) == 0)
    def _():
        acc_ref[...] = jnp.zeros_like(acc_ref)

    xk = x_ref[...]
    nan = jnp.isnan(xk)
    # Zero NaN inputs BEFORE forming any product (NaN * 0 = NaN) and build the
    # validity indicator that gates the x-independent constant term.
    xc = jnp.where(nan, jnp.zeros_like(xk), xk)
    valid = jnp.where(nan, jnp.zeros_like(xk), jnp.ones_like(xk))

    # sum_f lp  ==  WA @ x^2 + WB @ x + WK @ valid   (contraction over features, MXU)
    acc = jnp.dot(wa_ref[...], xc * xc, preferred_element_type=jnp.float32)
    acc = acc + jnp.dot(wb_ref[...], xc, preferred_element_type=jnp.float32)
    acc = acc + jnp.dot(wk_ref[...], valid, preferred_element_type=jnp.float32)
    acc_ref[...] += acc
    out_ref[...] = acc_ref[...]


def _round_up(x, m):
    return (x + m - 1) // m * m


def _largest_tile(n, candidates=(512, 384, 256, 128)):
    """Largest candidate tile dividing n (n is always a multiple of 128)."""
    for t in candidates:
        if n % t == 0:
            return t
    return n


def region_graph_layer_forward(x, mask, loc, scale, pad_mask):
    """Pallas forward pass.

    x        : [B, in_features] float32
    mask     : [R, D] int32 feature indices per region (already padded)
    loc/scale: [R, C, D] float32 Gaussian parameters
    pad_mask : [R, 1, D] bool
    returns  : [B, R, C] float32 (matches the PyTorch module output, eval mode)
    """
    batch, n_features = x.shape
    n_regions, channels, dim = loc.shape

    x = x.astype(jnp.float32)
    loc = loc.astype(jnp.float32)
    scale = scale.astype(jnp.float32)
    pm = pad_mask.reshape(n_regions, 1, dim).astype(jnp.float32)

    # x-independent coefficients, pad mask folded in (parameter-sized, computed once).
    inv_var = 1.0 / (scale * scale)
    coef_a = (-0.5 * inv_var) * pm                               # [R, C, D]
    coef_b = (loc * inv_var) * pm                                # [R, C, D]
    coef_k = (-0.5 * loc * loc * inv_var - jnp.log(scale) - _HALF_LOG_2PI) * pm

    # Fold the region gather + sum over D into a dense per-feature coefficient matrix:
    #   W[r*C + c, f] = sum_{d: mask[r,d]==f} coef[r, c, d]
    # Padded dummy dims already carry zero coefficients, so duplicate mask entries
    # introduced by padding contribute nothing.
    r_idx = jnp.arange(n_regions)[:, None, None]
    c_idx = jnp.arange(channels)[None, :, None]
    f_idx = mask[:, None, :]                                     # [R, 1, D]

    def scatter_dense(coef):
        w = jnp.zeros((n_regions, channels, n_features), jnp.float32)
        w = w.at[r_idx, c_idx, f_idx].add(coef)
        return w.reshape(n_regions * channels, n_features)

    wa = scatter_dense(coef_a)
    wb = scatter_dense(coef_b)
    wk = scatter_dense(coef_k)

    # Tile selection: (8,128)-aligned, feature reduction innermost, batch on lanes.
    rc = n_regions * channels
    rcp = _round_up(rc, 128)
    fp = _round_up(n_features, 128)
    tm = _largest_tile(rcp)
    tk = _largest_tile(fp)
    if batch <= 1024:
        tb, bp = batch, batch                                    # full batch block
    else:
        tb = 512
        bp = _round_up(batch, tb)

    pad_w = ((0, rcp - rc), (0, fp - n_features))
    wa = jnp.pad(wa, pad_w)
    wb = jnp.pad(wb, pad_w)
    wk = jnp.pad(wk, pad_w)
    # Transposed, zero-padded inputs: padded feature rows have zero coefficients and
    # padded batch columns are sliced away, so zero padding is semantically inert.
    xt = jnp.pad(jnp.transpose(x), ((0, fp - n_features), (0, bp - batch)))

    grid = (rcp // tm, bp // tb, fp // tk)

    out_rcb = pl.pallas_call(
        _leaf_matmul_kernel,
        out_shape=jax.ShapeDtypeStruct((rcp, bp), jnp.float32),
        grid_spec=pltpu.PrefetchScalarGridSpec(
            num_scalar_prefetch=0,
            grid=grid,
            in_specs=[
                pl.BlockSpec((tk, tb), lambda i, j, k: (k, j)),   # x^T features
                pl.BlockSpec((tm, tk), lambda i, j, k: (i, k)),   # WA
                pl.BlockSpec((tm, tk), lambda i, j, k: (i, k)),   # WB
                pl.BlockSpec((tm, tk), lambda i, j, k: (i, k)),   # WK
            ],
            out_specs=pl.BlockSpec((tm, tb), lambda i, j, k: (i, j)),
            scratch_shapes=[pltpu.VMEM((tm, tb), jnp.float32)],
        ),
        compiler_params=pltpu.CompilerParams(
            dimension_semantics=("parallel", "parallel", "arbitrary"),
            # Per-step footprint (<= ~15 MiB double-buffered) stays well below this
            # limit on every generation (v7x physical VMEM: 64 MiB per TensorCore).
            vmem_limit_bytes=32 * 1024 * 1024,
        ),
    )(xt, wa, wb, wk)

    out = out_rcb[:rc, :batch].reshape(n_regions, channels, batch)
    return jnp.transpose(out, (2, 0, 1))                         # [B, R, C]


def _reference_forward(x, mask, loc, scale, pad_mask):
    """Pure-JAX reference mirroring the PyTorch code path (eval mode)."""
    xg = x[:, mask]                                              # [B, R, D]
    xg = xg[:, :, None, :]                                       # [B, R, 1, D]
    lp = (-0.5 * ((xg - loc[None]) / scale[None]) ** 2
          - jnp.log(scale)[None] - _HALF_LOG_2PI)                # [B, R, C, D]
    lp = jnp.where(jnp.isnan(lp), 0.0, lp)
    lp = jnp.where(pad_mask[None], lp, 0.0)
    return jnp.sum(lp, axis=-1)                                  # [B, R, C]


def _build_region_graph(in_features, rg_depth, n_repetitions, seed=42):
    """Deterministic random-binary-tree style region construction."""
    rng = np.random.RandomState(seed)
    regions = []
    for _ in range(n_repetitions):
        perm = rng.permutation(in_features)
        for chunk in np.array_split(perm, 2 ** rg_depth):
            regions.append(tuple(int(i) for i in chunk))
    return regions


if __name__ == "__main__":
    # Small, module-consistent shapes.
    batch = 2
    in_features = 15          # -> pad = 1 (exercises the pad_mask path)
    out_channels = 8
    rg_depth = 2
    n_repetitions = 2

    regions = _build_region_graph(in_features, rg_depth, n_repetitions)
    in_regions = len(regions)                                    # 8
    pad = -in_features % 2 ** rg_depth                           # 1
    dimension = (in_features + pad) // 2 ** rg_depth             # 4

    # Build mask / pad_mask exactly as the module's __init__ does.
    mask_list = [list(r) for r in regions]
    pad_mask_np = np.full([in_regions, 1, dimension], True)
    for i in range(in_regions):
        n_dummy = dimension - len(regions[i])
        if n_dummy > 0:
            pad_mask_np[i, :, -n_dummy:] = False
            mask_list[i] = mask_list[i] + [mask_list[i][-1]] * n_dummy
    mask = jnp.asarray(np.array(mask_list, dtype=np.int32))
    pad_mask = jnp.asarray(pad_mask_np)

    # Deterministic Gaussian leaf parameters (GaussianLayer-style init).
    key = jax.random.PRNGKey(0)
    k_loc, k_scale, k_x = jax.random.split(key, 3)
    loc = jax.random.normal(k_loc, (in_regions, out_channels, dimension),
                            dtype=jnp.float32)
    scale = 0.5 + jax.random.uniform(
        k_scale, (in_regions, out_channels, dimension), dtype=jnp.float32)

    # Deterministic inputs; one NaN exercises the marginalization path.
    x = jax.random.normal(k_x, (batch, in_features), dtype=jnp.float32)
    x = x.at[0, 3].set(jnp.nan)

    out = region_graph_layer_forward(x, mask, loc, scale, pad_mask)
    out = jax.block_until_ready(out)

    ref = _reference_forward(x, mask, loc, scale, pad_mask)
    # Tolerance note: the kernel contracts over features on the MXU; depending on the
    # TPU generation / compiler defaults, f32 matmuls may execute as reduced-precision
    # bf16 passes.  Any semantic error (wrong mask/coefficient/term) produces O(1)
    # deviations, so this tolerance still validates correctness while being robust to
    # matmul rounding.
    np.testing.assert_allclose(np.asarray(out), np.asarray(ref),
                               rtol=2e-2, atol=2e-2)
    assert out.shape == (batch, in_regions, out_channels)
    print("KERNEL_OK")
</pallas_src>

<mosaic_0001>
module attributes {stable_mosaic.version = 11 : i64} {
  func.func @_leaf_matmul_kernel(%arg0: i32, %arg1: i32, %arg2: i32, %arg3: memref<128x2xf32, #tpu.memory_space<vmem>>, %arg4: memref<128x128xf32, #tpu.memory_space<vmem>>, %arg5: memref<128x128xf32, #tpu.memory_space<vmem>>, %arg6: memref<128x128xf32, #tpu.memory_space<vmem>>, %arg7: memref<128x2xf32, #tpu.memory_space<vmem>>, %arg8: memref<128x2xf32, #tpu.memory_space<vmem>>) attributes {dimension_semantics = [#tpu.dimension_semantics<parallel>, #tpu.dimension_semantics<parallel>, #tpu.dimension_semantics<arbitrary>], iteration_bounds = array<i64: 1, 1, 1>, scalar_prefetch = 0 : i64, scratch_operands = 1 : i64, tpu.core_type = #tpu.core_type<tc>, window_params = [{transform_indices = @transform_0, window_bounds = array<i64: 128, 2>}, {transform_indices = @transform_1, window_bounds = array<i64: 128, 128>}, {transform_indices = @transform_2, window_bounds = array<i64: 128, 128>}, {transform_indices = @transform_3, window_bounds = array<i64: 128, 128>}, {transform_indices = @transform_4, window_bounds = array<i64: 128, 2>}]} {
    %c0_i32 = arith.constant 0 : i32
    %0 = arith.cmpi eq, %arg2, %c0_i32 : i32
    %1 = arith.extui %0 : i1 to i32
    %c0_i32_0 = arith.constant 0 : i32
    %2 = arith.cmpi ne, %1, %c0_i32_0 : i32
    scf.if %2 {
      %cst_21 = arith.constant 0.000000e+00 : f32
      %24 = vector.broadcast %cst_21 : f32 to vector<128x2xf32>
      %c0_22 = arith.constant 0 : index
      %c0_23 = arith.constant 0 : index
      %25 = vector.load %arg8[%c0_22, %c0_23] : memref<128x2xf32, #tpu.memory_space<vmem>>, vector<128x2xf32>
      tpu.vector_store %arg8[%c0_22, %c0_23], %24 {strides = array<i32>} : memref<128x2xf32, #tpu.memory_space<vmem>>, vector<128x2xf32>,
    } else {
    }
    %c0 = arith.constant 0 : index
    %c0_1 = arith.constant 0 : index
    %3 = vector.load %arg3[%c0, %c0_1] : memref<128x2xf32, #tpu.memory_space<vmem>>, vector<128x2xf32>
    %4 = arith.cmpf one, %3, %3 : vector<128x2xf32>
    %cst = arith.constant 0.000000e+00 : f32
    %5 = vector.broadcast %cst : f32 to vector<128x2xf32>
    %6 = arith.select %4, %5, %3 : vector<128x2xi1>, vector<128x2xf32>
    %cst_2 = arith.constant 0.000000e+00 : f32
    %7 = vector.broadcast %cst_2 : f32 to vector<128x2xf32>
    %cst_3 = arith.constant 1.000000e+00 : f32
    %8 = vector.broadcast %cst_3 : f32 to vector<128x2xf32>
    %9 = arith.select %4, %7, %8 : vector<128x2xi1>, vector<128x2xf32>
    %c0_4 = arith.constant 0 : index
    %c0_5 = arith.constant 0 : index
    %10 = vector.load %arg4[%c0_4, %c0_5] : memref<128x128xf32, #tpu.memory_space<vmem>>, vector<128x128xf32>
    %11 = arith.mulf %6, %6 : vector<128x2xf32>
    %cst_6 = arith.constant dense<0.000000e+00> : vector<128x2xf32>
    %12 = tpu.matmul %10, %11, %cst_6 {dimension_numbers = #tpu.dot_dimension_numbers<[1], [0], [0], [1], [0, 0, 1, 1], [], []>} : vector<128x128xf32>, vector<128x2xf32>, vector<128x2xf32> -> vector<128x2xf32>
    %c0_7 = arith.constant 0 : index
    %c0_8 = arith.constant 0 : index
    %13 = vector.load %arg5[%c0_7, %c0_8] : memref<128x128xf32, #tpu.memory_space<vmem>>, vector<128x128xf32>
    %cst_9 = arith.constant dense<0.000000e+00> : vector<128x2xf32>
    %14 = tpu.matmul %13, %6, %cst_9 {dimension_numbers = #tpu.dot_dimension_numbers<[1], [0], [0], [1], [0, 0, 1, 1], [], []>} : vector<128x128xf32>, vector<128x2xf32>, vector<128x2xf32> -> vector<128x2xf32>
    %15 = arith.addf %12, %14 : vector<128x2xf32>
    %c0_10 = arith.constant 0 : index
    %c0_11 = arith.constant 0 : index
    %16 = vector.load %arg6[%c0_10, %c0_11] : memref<128x128xf32, #tpu.memory_space<vmem>>, vector<128x128xf32>
    %cst_12 = arith.constant dense<0.000000e+00> : vector<128x2xf32>
    %17 = tpu.matmul %16, %9, %cst_12 {dimension_numbers = #tpu.dot_dimension_numbers<[1], [0], [0], [1], [0, 0, 1, 1], [], []>} : vector<128x128xf32>, vector<128x2xf32>, vector<128x2xf32> -> vector<128x2xf32>
    %18 = arith.addf %15, %17 : vector<128x2xf32>
    %c0_13 = arith.constant 0 : index
    %c0_14 = arith.constant 0 : index
    %19 = vector.load %arg8[%c0_13, %c0_14] : memref<128x2xf32, #tpu.memory_space<vmem>>, vector<128x2xf32>
    %20 = arith.addf %19, %18 : vector<128x2xf32>
    %c0_15 = arith.constant 0 : index
    %c0_16 = arith.constant 0 : index
    %21 = vector.load %arg8[%c0_15, %c0_16] : memref<128x2xf32, #tpu.memory_space<vmem>>, vector<128x2xf32>
    tpu.vector_store %arg8[%c0_15, %c0_16], %20 {strides = array<i32>} : memref<128x2xf32, #tpu.memory_space<vmem>>, vector<128x2xf32>,
    %c0_17 = arith.constant 0 : index
    %c0_18 = arith.constant 0 : index
    %22 = vector.load %arg8[%c0_17, %c0_18] : memref<128x2xf32, #tpu.memory_space<vmem>>, vector<128x2xf32>
    %c0_19 = arith.constant 0 : index
    %c0_20 = arith.constant 0 : index
    %23 = vector.load %arg7[%c0_19, %c0_20] : memref<128x2xf32, #tpu.memory_space<vmem>>, vector<128x2xf32>
    tpu.vector_store %arg7[%c0_19, %c0_20], %22 {strides = array<i32>} : memref<128x2xf32, #tpu.memory_space<vmem>>, vector<128x2xf32>,
    return
  }
  func.func @transform_0(%arg0: i32, %arg1: i32, %arg2: i32) -> (i32, i32) {
    %c0_i32 = arith.constant 0 : i32
    return %arg2, %arg1 : i32, i32
  }
  func.func @transform_1(%arg0: i32, %arg1: i32, %arg2: i32) -> (i32, i32) {
    %c0_i32 = arith.constant 0 : i32
    return %arg0, %arg2 : i32, i32
  }
  func.func @transform_2(%arg0: i32, %arg1: i32, %arg2: i32) -> (i32, i32) {
    %c0_i32 = arith.constant 0 : i32
    return %arg0, %arg2 : i32, i32
  }
  func.func @transform_3(%arg0: i32, %arg1: i32, %arg2: i32) -> (i32, i32) {
    %c0_i32 = arith.constant 0 : i32
    return %arg0, %arg2 : i32, i32
  }
  func.func @transform_4(%arg0: i32, %arg1: i32, %arg2: i32) -> (i32, i32) {
    %c0_i32 = arith.constant 0 : i32
    return %arg0, %arg1 : i32, i32
  }
}

</mosaic_0001>

<llo_original>
// kernel: tpu_custom_call.1
$region0: #{tpu_custom_call.1}
  #allocation0 [shape = 'u32[]', space=smem, size = 0x4, offset = 0x4, fixed_abs, tag = 'smem constant byte address 0x4 - core index']
  #allocation1 [shape = 'u32[144,128]{1,0:T(1,128)}', space=vmem, size = 0x12000, scoped, tag = 'internal scratch']
  #allocation2 [shape = 'f32[128,2]{1,0:T(8,128)}', space=vmem, size = 0x10000, scoped, tag = 'scratch operand']
  %s0 = inlined_call_operand.vmem [shape: f32[128,2], index: 0, kind: input, shape index: {}]
  %s1 = inlined_call_operand.vmem [shape: f32[128,128], index: 1, kind: input, shape index: {}]
  %s2 = inlined_call_operand.hbm [shape: f32[128,128], index: 2, kind: input, shape index: {}]
  %s3 = inlined_call_operand.hbm [shape: f32[128,128], index: 3, kind: input, shape index: {}]
  %s4 = inlined_call_operand.vmem [shape: f32[128,2], index: 4, kind: output, shape index: {}]
  %s5 = sld [smem:[#allocation0]]
  $region38: #{tpu_custom_call.1} parent=0
    _
  %s7 = ssub.s32 1, %s5
  %s8 = scalar_select 0, %s7, %s5
  $region1: #{tpu_custom_call.1} parent=0
    #allocation3 [shape = 'u8[65536]{0}', space=vmem, size = 0x10000, scoped, tag = 'input window, operand 2, single buffered']
    #allocation4 [shape = 's32[1]{0}', space=sflag, size = 0x4, scoped, tag = 'scoped memory for tpu_custom_call.1']
    #allocation5 [shape = 'u8[65536]{0}', space=vmem, size = 0x10000, scoped, tag = 'input window, operand 3, single buffered']
    #allocation6 [shape = 's32[1]{0}', space=sflag, size = 0x4, scoped, tag = 'scoped memory for tpu_custom_call.1']
    %9 = vsyncpa [#allocation4], 0
    %10 = vsyncpa [#allocation6], 0
    // Predicated region
    $region2: #{tpu_custom_call.1} parent=1 // pred_check
      _
    $region3: #{tpu_custom_call.1} parent=1 // pred_check_branch
      %12 = sbr.rel (0) target = $region5
    $region4: #{tpu_custom_call.1} parent=1 // pred_region
      _
    $region5: #{tpu_custom_call.1} parent=1 // pred_fallthru
      _
    // Predicated region
    $region6: #{tpu_custom_call.1} parent=1 // pred_check
      _
    $region7: #{tpu_custom_call.1} parent=1 // pred_check_branch
      %14 = sbr.rel (0) target = $region9
    $region8: #{tpu_custom_call.1} parent=1 // pred_region
      _
    $region9: #{tpu_custom_call.1} parent=1 // pred_fallthru
      _
    // Predicated region
    $region10: #{tpu_custom_call.1} parent=1 // pred_check
      _
    $region11: #{tpu_custom_call.1} parent=1 // pred_check_branch
      %16 = sbr.rel (0) target = $region13
    $region12: #{tpu_custom_call.1} parent=1 // pred_region
      %s18 = ssub.s32 2048, 2048
      %19 = vsyncadd [#allocation4], %s18
      %s20 = sshll.u32 [#allocation3], 4
      %s21 = int_to_ptr.vmem [resolvable:$true] %s20
      %26 = dma.hbm_to_vmem [thread:$0]  %s2, 2048, %s21, [#allocation4], 128, 128, 8
    $region13: #{tpu_custom_call.1} parent=1 // pred_fallthru
      _
    // Predicated region
    $region14: #{tpu_custom_call.1} parent=1 // pred_check
      _
    $region15: #{tpu_custom_call.1} parent=1 // pred_check_branch
      %28 = sbr.rel (0) target = $region17
    $region16: #{tpu_custom_call.1} parent=1 // pred_region
      %s30 = ssub.s32 2048, 2048
      %31 = vsyncadd [#allocation6], %s30
      %s32 = sshll.u32 [#allocation5], 4
      %s33 = int_to_ptr.vmem [resolvable:$true] %s32
      %38 = dma.hbm_to_vmem [thread:$0]  %s3, 2048, %s33, [#allocation6], 128, 128, 8
    $region17: #{tpu_custom_call.1} parent=1 // pred_fallthru
      _
    // Predicated region
    $region18: #{tpu_custom_call.1} parent=1 // pred_check
      _
    $region19: #{tpu_custom_call.1} parent=1 // pred_check_branch
      %40 = sbr.rel (0) target = $region21
    $region20: #{tpu_custom_call.1} parent=1 // pred_region
      %41 = dma.done [#allocation4], 2048
    $region21: #{tpu_custom_call.1} parent=1 // pred_fallthru
      _
    // Predicated region
    $region22: #{tpu_custom_call.1} parent=1 // pred_check
      _
    $region23: #{tpu_custom_call.1} parent=1 // pred_check_branch
      %43 = sbr.rel (0) target = $region25
    $region24: #{tpu_custom_call.1} parent=1 // pred_region
      %44 = dma.done [#allocation6], 2048
    $region25: #{tpu_custom_call.1} parent=1 // pred_fallthru
      _
    %p45 = scmp.eq.s32.totalorder 0, 0
    // Predicated region
    $region26: #{tpu_custom_call.1} parent=1 // pred_check
      %p46 = pneg %p45
    $region27: #{tpu_custom_call.1} parent=1 // pred_check_branch
      %48 = sbr.rel (%p46) target = $region29
    $region28: #{tpu_custom_call.1} parent=1 // pred_region
      %vm49 = vcmask 15360
      %50 = vst.msk [vmem:[#allocation2] sm:$0xff] %vm49, 0.0
      %51 = vst.msk [vmem:[#allocation2 + $0x8] sm:$0xff] %vm49, 0.0
      %52 = vst.msk [vmem:[#allocation2 + $0x10] sm:$0xff] %vm49, 0.0
      %53 = vst.msk [vmem:[#allocation2 + $0x18] sm:$0xff] %vm49, 0.0
      %54 = vst.msk [vmem:[#allocation2 + $0x20] sm:$0xff] %vm49, 0.0
      %55 = vst.msk [vmem:[#allocation2 + $0x28] sm:$0xff] %vm49, 0.0
      %56 = vst.msk [vmem:[#allocation2 + $0x30] sm:$0xff] %vm49, 0.0
      %57 = vst.msk [vmem:[#allocation2 + $0x38] sm:$0xff] %vm49, 0.0
      %58 = vst.msk [vmem:[#allocation2 + $0x40] sm:$0xff] %vm49, 0.0
      %59 = vst.msk [vmem:[#allocation2 + $0x48] sm:$0xff] %vm49, 0.0
      %60 = vst.msk [vmem:[#allocation2 + $0x50] sm:$0xff] %vm49, 0.0
      %61 = vst.msk [vmem:[#allocation2 + $0x58] sm:$0xff] %vm49, 0.0
      %62 = vst.msk [vmem:[#allocation2 + $0x60] sm:$0xff] %vm49, 0.0
      %63 = vst.msk [vmem:[#allocation2 + $0x68] sm:$0xff] %vm49, 0.0
      %64 = vst.msk [vmem:[#allocation2 + $0x70] sm:$0xff] %vm49, 0.0
      %65 = vst.msk [vmem:[#allocation2 + $0x78] sm:$0xff] %vm49, 0.0
    $region29: #{tpu_custom_call.1} parent=1 // pred_fallthru
      _
    %v66 = vld [vmem:[%s0] sm:$0xff]
    %v67 = vld [vmem:[%s0 + $0x8] sm:$0xff]
    %v68 = vld [vmem:[%s0 + $0x10] sm:$0xff]
    %v69 = vld [vmem:[%s0 + $0x18] sm:$0xff]
    %v70 = vld [vmem:[%s0 + $0x20] sm:$0xff]
    %v71 = vld [vmem:[%s0 + $0x28] sm:$0xff]
    %v72 = vld [vmem:[%s0 + $0x30] sm:$0xff]
    %v73 = vld [vmem:[%s0 + $0x38] sm:$0xff]
    %v74 = vld [vmem:[%s0 + $0x40] sm:$0xff]
    %v75 = vld [vmem:[%s0 + $0x48] sm:$0xff]
    %v76 = vld [vmem:[%s0 + $0x50] sm:$0xff]
    %v77 = vld [vmem:[%s0 + $0x58] sm:$0xff]
    %v78 = vld [vmem:[%s0 + $0x60] sm:$0xff]
    %v79 = vld [vmem:[%s0 + $0x68] sm:$0xff]
    %v80 = vld [vmem:[%s0 + $0x70] sm:$0xff]
    %v81 = vld [vmem:[%s0 + $0x78] sm:$0xff]
    %vm82 = vcmp.ne.f32.partialorder %v66, %v66
    %vm83 = vcmp.ne.f32.partialorder %v67, %v67
    %vm84 = vcmp.ne.f32.partialorder %v68, %v68
    %vm85 = vcmp.ne.f32.partialorder %v69, %v69
    %vm86 = vcmp.ne.f32.partialorder %v70, %v70
    %vm87 = vcmp.ne.f32.partialorder %v71, %v71
    %vm88 = vcmp.ne.f32.partialorder %v72, %v72
    %vm89 = vcmp.ne.f32.partialorder %v73, %v73
    %vm90 = vcmp.ne.f32.partialorder %v74, %v74
    %vm91 = vcmp.ne.f32.partialorder %v75, %v75
    %vm92 = vcmp.ne.f32.partialorder %v76, %v76
    %vm93 = vcmp.ne.f32.partialorder %v77, %v77
    %vm94 = vcmp.ne.f32.partialorder %v78, %v78
    %vm95 = vcmp.ne.f32.partialorder %v79, %v79
    %vm96 = vcmp.ne.f32.partialorder %v80, %v80
    %vm97 = vcmp.ne.f32.partialorder %v81, %v81
    %v98 = vsel %vm82, 0.0, %v66
    %v99 = vsel %vm83, 0.0, %v67
    %v100 = vsel %vm84, 0.0, %v68
    %v101 = vsel %vm85, 0.0, %v69
    %v102 = vsel %vm86, 0.0, %v70
    %v103 = vsel %vm87, 0.0, %v71
    %v104 = vsel %vm88, 0.0, %v72
    %v105 = vsel %vm89, 0.0, %v73
    %v106 = vsel %vm90, 0.0, %v74
    %v107 = vsel %vm91, 0.0, %v75
    %v108 = vsel %vm92, 0.0, %v76
    %v109 = vsel %vm93, 0.0, %v77
    %v110 = vsel %vm94, 0.0, %v78
    %v111 = vsel %vm95, 0.0, %v79
    %v112 = vsel %vm96, 0.0, %v80
    %v113 = vsel %vm97, 0.0, %v81
    %v114 = vsel %vm82, 0.0, 1.0
    %v115 = vsel %vm83, 0.0, 1.0
    %v116 = vsel %vm84, 0.0, 1.0
    %v117 = vsel %vm85, 0.0, 1.0
    %v118 = vsel %vm86, 0.0, 1.0
    %v119 = vsel %vm87, 0.0, 1.0
    %v120 = vsel %vm88, 0.0, 1.0
    %v121 = vsel %vm89, 0.0, 1.0
    %v122 = vsel %vm90, 0.0, 1.0
    %v123 = vsel %vm91, 0.0, 1.0
    %v124 = vsel %vm92, 0.0, 1.0
    %v125 = vsel %vm93, 0.0, 1.0
    %v126 = vsel %vm94, 0.0, 1.0
    %v127 = vsel %vm95, 0.0, 1.0
    %v128 = vsel %vm96, 0.0, 1.0
    %v129 = vsel %vm97, 0.0, 1.0
    %v130 = vld [vmem:[%s1] sm:$0xff]
    %v131 = vld [vmem:[%s1 + $0x8] sm:$0xff]
    %v132 = vld [vmem:[%s1 + $0x10] sm:$0xff]
    %v133 = vld [vmem:[%s1 + $0x18] sm:$0xff]
    %v134 = vld [vmem:[%s1 + $0x20] sm:$0xff]
    %v135 = vld [vmem:[%s1 + $0x28] sm:$0xff]
    %v136 = vld [vmem:[%s1 + $0x30] sm:$0xff]
    %v137 = vld [vmem:[%s1 + $0x38] sm:$0xff]
    %v138 = vld [vmem:[%s1 + $0x40] sm:$0xff]
    %v139 = vld [vmem:[%s1 + $0x48] sm:$0xff]
    %v140 = vld [vmem:[%s1 + $0x50] sm:$0xff]
    %v141 = vld [vmem:[%s1 + $0x58] sm:$0xff]
    %v142 = vld [vmem:[%s1 + $0x60] sm:$0xff]
    %v143 = vld [vmem:[%s1 + $0x68] sm:$0xff]
    %v144 = vld [vmem:[%s1 + $0x70] sm:$0xff]
    %v145 = vld [vmem:[%s1 + $0x78] sm:$0xff]
    %v146 = vmul.f32 %v98, %v98
    %v147 = vmul.f32 %v99, %v99
    %v148 = vmul.f32 %v100, %v100
    %v149 = vmul.f32 %v101, %v101
    %v150 = vmul.f32 %v102, %v102
    %v151 = vmul.f32 %v103, %v103
    %v152 = vmul.f32 %v104, %v104
    %v153 = vmul.f32 %v105, %v105
    %v154 = vmul.f32 %v106, %v106
    %v155 = vmul.f32 %v107, %v107
    %v156 = vmul.f32 %v108, %v108
    %v157 = vmul.f32 %v109, %v109
    %v158 = vmul.f32 %v110, %v110
    %v159 = vmul.f32 %v111, %v111
    %v160 = vmul.f32 %v112, %v112
    %v161 = vmul.f32 %v113, %v113
    %v162 = vld [vmem:[#allocation3] sm:$0xff]
    %v163 = vld [vmem:[#allocation3 + $0x8] sm:$0xff]
    %v164 = vld [vmem:[#allocation3 + $0x10] sm:$0xff]
    %v165 = vld [vmem:[#allocation3 + $0x18] sm:$0xff]
    %v166 = vld [vmem:[#allocation3 + $0x20] sm:$0xff]
    %v167 = vld [vmem:[#allocation3 + $0x28] sm:$0xff]
    %v168 = vld [vmem:[#allocation3 + $0x30] sm:$0xff]
    %v169 = vld [vmem:[#allocation3 + $0x38] sm:$0xff]
    %v170 = vld [vmem:[#allocation3 + $0x40] sm:$0xff]
    %v171 = vld [vmem:[#allocation3 + $0x48] sm:$0xff]
    %v172 = vld [vmem:[#allocation3 + $0x50] sm:$0xff]
    %v173 = vld [vmem:[#allocation3 + $0x58] sm:$0xff]
    %v174 = vld [vmem:[#allocation3 + $0x60] sm:$0xff]
    %v175 = vld [vmem:[#allocation3 + $0x68] sm:$0xff]
    %v176 = vld [vmem:[#allocation3 + $0x70] sm:$0xff]
    %v177 = vld [vmem:[#allocation3 + $0x78] sm:$0xff]
    %178 = vmatprep.subr.mxu0 0.0
    %179 = vmatpush1.msra.mxu0 %v113
    %180 = vmatprep.subr.mxu0 0.0
    %181 = vmatpush1.msra.mxu0 %v112
    %182 = vmatprep.subr.mxu0 0.0
    %183 = vmatpush1.msra.mxu0 %v111
    %184 = vmatprep.subr.mxu0 0.0
    %185 = vmatpush1.msra.mxu0 %v110
    %186 = vmatprep.subr.mxu0 0.0
    %187 = vmatpush1.msra.mxu0 %v109
    %188 = vmatprep.subr.mxu0 0.0
    %189 = vmatpush1.msra.mxu0 %v108
    %190 = vmatprep.subr.mxu0 0.0
    %191 = vmatpush1.msra.mxu0 %v107
    %192 = vmatprep.subr.mxu0 0.0
    %193 = vmatpush1.msra.mxu0 %v106
    %194 = vmatprep.subr.mxu0 0.0
    %195 = vmatpush1.msra.mxu0 %v105
    %196 = vmatprep.subr.mxu0 0.0
    %197 = vmatpush1.msra.mxu0 %v104
    %198 = vmatprep.subr.mxu0 0.0
    %199 = vmatpush1.msra.mxu0 %v103
    %200 = vmatprep.subr.mxu0 0.0
    %201 = vmatpush1.msra.mxu0 %v102
    %202 = vmatprep.subr.mxu0 0.0
    %203 = vmatpush1.msra.mxu0 %v101
    %204 = vmatprep.subr.mxu0 0.0
    %205 = vmatpush1.msra.mxu0 %v100
    %206 = vmatprep.subr.mxu0 0.0
    %207 = vmatpush1.msra.mxu0 %v99
    %208 = vmatprep.subr.mxu0 0.0
    %209 = vmatpush1.msra.mxu0 %v98
    %210 = vmatprep.subr.mxu0 0.0
    %211 = vmatpush2.msra.mxu0 0.0
    %212 = vmatprep.subr.mxu0 0.0
    %213 = vmatpush2.msra.mxu0 0.0
    %214 = vmatprep.subr.mxu0 0.0
    %215 = vmatpush2.msra.mxu0 0.0
    %216 = vmatprep.subr.mxu0 0.0
    %217 = vmatpush2.msra.mxu0 0.0
    %218 = vmatprep.subr.mxu0 0.0
    %219 = vmatpush2.msra.mxu0 0.0
    %220 = vmatprep.subr.mxu0 0.0
    %221 = vmatpush2.msra.mxu0 0.0
    %222 = vmatprep.subr.mxu0 0.0
    %223 = vmatpush2.msra.mxu0 0.0
    %224 = vmatprep.subr.mxu0 0.0
    %225 = vmatpush2.msra.mxu0 0.0
    %226 = vmatprep.subr.mxu0 0.0
    %227 = vmatpush2.msra.mxu0 0.0
    %228 = vmatprep.subr.mxu0 0.0
    %229 = vmatpush2.msra.mxu0 0.0
    %230 = vmatprep.subr.mxu0 0.0
    %231 = vmatpush2.msra.mxu0 0.0
    %232 = vmatprep.subr.mxu0 0.0
    %233 = vmatpush2.msra.mxu0 0.0
    %234 = vmatprep.subr.mxu0 0.0
    %235 = vmatpush2.msra.mxu0 0.0
    %236 = vmatprep.subr.mxu0 0.0
    %237 = vmatpush2.msra.mxu0 0.0
    %238 = vmatprep.subr.mxu0 0.0
    %239 = vmatpush2.msra.mxu0 0.0
    %240 = vmatprep.subr.mxu0 0.0
    %241 = vmatpush2.msra.mxu0 0.0
    %242 = vmatprep.mubr.f32.mxu0 0.0
    %243 = vmatmul.mubr.f32.gmra.mxu0 %v162
    %v244 = vpop.f32.mrf.mxu0
    %v245 = vadd.f32 0.0, %v244
    %v246 = vpop.f32.mrf.mxu0
    %247 = vmatprep.mubr.f32.mxu0 0.0
    %248 = vmatmul.mubr.f32.gmra.mxu0 %v163
    %v249 = vpop.f32.mrf.mxu0
    %v250 = vadd.f32 0.0, %v249
    %v251 = vpop.f32.mrf.mxu0
    %252 = vmatprep.mubr.f32.mxu0 0.0
    %253 = vmatmul.mubr.f32.gmra.mxu0 %v164
    %v254 = vpop.f32.mrf.mxu0
    %v255 = vadd.f32 0.0, %v254
    %v256 = vpop.f32.mrf.mxu0
    %257 = vmatprep.mubr.f32.mxu0 0.0
    %258 = vmatmul.mubr.f32.gmra.mxu0 %v165
    %v259 = vpop.f32.mrf.mxu0
    %v260 = vadd.f32 0.0, %v259
    %v261 = vpop.f32.mrf.mxu0
    %262 = vmatprep.mubr.f32.mxu0 0.0
    %263 = vmatmul.mubr.f32.gmra.mxu0 %v166
    %v264 = vpop.f32.mrf.mxu0
    %v265 = vadd.f32 0.0, %v264
    %v266 = vpop.f32.mrf.mxu0
    %267 = vmatprep.mubr.f32.mxu0 0.0
    %268 = vmatmul.mubr.f32.gmra.mxu0 %v167
    %v269 = vpop.f32.mrf.mxu0
    %v270 = vadd.f32 0.0, %v269
    %v271 = vpop.f32.mrf.mxu0
    %272 = vmatprep.mubr.f32.mxu0 0.0
    %273 = vmatmul.mubr.f32.gmra.mxu0 %v168
    %v274 = vpop.f32.mrf.mxu0
    %v275 = vadd.f32 0.0, %v274
    %v276 = vpop.f32.mrf.mxu0
    %277 = vmatprep.mubr.f32.mxu0 0.0
    %278 = vmatmul.mubr.f32.gmra.mxu0 %v169
    %v279 = vpop.f32.mrf.mxu0
    %v280 = vadd.f32 0.0, %v279
    %v281 = vpop.f32.mrf.mxu0
    %282 = vmatprep.mubr.f32.mxu0 0.0
    %283 = vmatmul.mubr.f32.gmra.mxu0 %v170
    %v284 = vpop.f32.mrf.mxu0
    %v285 = vadd.f32 0.0, %v284
    %v286 = vpop.f32.mrf.mxu0
    %287 = vmatprep.mubr.f32.mxu0 0.0
    %288 = vmatmul.mubr.f32.gmra.mxu0 %v171
    %v289 = vpop.f32.mrf.mxu0
    %v290 = vadd.f32 0.0, %v289
    %v291 = vpop.f32.mrf.mxu0
    %292 = vmatprep.mubr.f32.mxu0 0.0
    %293 = vmatmul.mubr.f32.gmra.mxu0 %v172
    %v294 = vpop.f32.mrf.mxu0
    %v295 = vadd.f32 0.0, %v294
    %v296 = vpop.f32.mrf.mxu0
    %297 = vmatprep.mubr.f32.mxu0 0.0
    %298 = vmatmul.mubr.f32.gmra.mxu0 %v173
    %v299 = vpop.f32.mrf.mxu0
    %v300 = vadd.f32 0.0, %v299
    %v301 = vpop.f32.mrf.mxu0
    %302 = vmatprep.mubr.f32.mxu0 0.0
    %303 = vmatmul.mubr.f32.gmra.mxu0 %v174
    %v304 = vpop.f32.mrf.mxu0
    %v305 = vadd.f32 0.0, %v304
    %v306 = vpop.f32.mrf.mxu0
    %307 = vmatprep.mubr.f32.mxu0 0.0
    %308 = vmatmul.mubr.f32.gmra.mxu0 %v175
    %v309 = vpop.f32.mrf.mxu0
    %v310 = vadd.f32 0.0, %v309
    %v311 = vpop.f32.mrf.mxu0
    %312 = vmatprep.mubr.f32.mxu0 0.0
    %313 = vmatmul.mubr.f32.gmra.mxu0 %v176
    %v314 = vpop.f32.mrf.mxu0
    %v315 = vadd.f32 0.0, %v314
    %v316 = vpop.f32.mrf.mxu0
    %317 = vmatprep.mubr.f32.mxu0 0.0
    %318 = vmatmul.mubr.f32.gmra.mxu0 %v177
    %v319 = vpop.f32.mrf.mxu0
    %v320 = vadd.f32 0.0, %v319
    %v321 = vpop.f32.mrf.mxu0
    %322 = vdwg.mxu0
    %323 = vmatprep.subr.mxu0 0.0
    %324 = vmatpush1.msra.mxu0 %v161
    %325 = vmatprep.subr.mxu0 0.0
    %326 = vmatpush1.msra.mxu0 %v160
    %327 = vmatprep.subr.mxu0 0.0
    %328 = vmatpush1.msra.mxu0 %v159
    %329 = vmatprep.subr.mxu0 0.0
    %330 = vmatpush1.msra.mxu0 %v158
    %331 = vmatprep.subr.mxu0 0.0
    %332 = vmatpush1.msra.mxu0 %v157
    %333 = vmatprep.subr.mxu0 0.0
    %334 = vmatpush1.msra.mxu0 %v156
    %335 = vmatprep.subr.mxu0 0.0
    %336 = vmatpush1.msra.mxu0 %v155
    %337 = vmatprep.subr.mxu0 0.0
    %338 = vmatpush1.msra.mxu0 %v154
    %339 = vmatprep.subr.mxu0 0.0
    %340 = vmatpush1.msra.mxu0 %v153
    %341 = vmatprep.subr.mxu0 0.0
    %342 = vmatpush1.msra.mxu0 %v152
    %343 = vmatprep.subr.mxu0 0.0
    %344 = vmatpush1.msra.mxu0 %v151
    %345 = vmatprep.subr.mxu0 0.0
    %346 = vmatpush1.msra.mxu0 %v150
    %347 = vmatprep.subr.mxu0 0.0
    %348 = vmatpush1.msra.mxu0 %v149
    %349 = vmatprep.subr.mxu0 0.0
    %350 = vmatpush1.msra.mxu0 %v148
    %351 = vmatprep.subr.mxu0 0.0
    %352 = vmatpush1.msra.mxu0 %v147
    %353 = vmatprep.subr.mxu0 0.0
    %354 = vmatpush1.msra.mxu0 %v146
    %355 = vmatprep.subr.mxu0 0.0
    %356 = vmatpush2.msra.mxu0 0.0
    %357 = vmatprep.subr.mxu0 0.0
    %358 = vmatpush2.msra.mxu0 0.0
    %359 = vmatprep.subr.mxu0 0.0
    %360 = vmatpush2.msra.mxu0 0.0
    %361 = vmatprep.subr.mxu0 0.0
    %362 = vmatpush2.msra.mxu0 0.0
    %363 = vmatprep.subr.mxu0 0.0
    %364 = vmatpush2.msra.mxu0 0.0
    %365 = vmatprep.subr.mxu0 0.0
    %366 = vmatpush2.msra.mxu0 0.0
    %367 = vmatprep.subr.mxu0 0.0
    %368 = vmatpush2.msra.mxu0 0.0
    %369 = vmatprep.subr.mxu0 0.0
    %370 = vmatpush2.msra.mxu0 0.0
    %371 = vmatprep.subr.mxu0 0.0
    %372 = vmatpush2.msra.mxu0 0.0
    %373 = vmatprep.subr.mxu0 0.0
    %374 = vmatpush2.msra.mxu0 0.0
    %375 = vmatprep.subr.mxu0 0.0
    %376 = vmatpush2.msra.mxu0 0.0
    %377 = vmatprep.subr.mxu0 0.0
    %378 = vmatpush2.msra.mxu0 0.0
    %379 = vmatprep.subr.mxu0 0.0
    %380 = vmatpush2.msra.mxu0 0.0
    %381 = vmatprep.subr.mxu0 0.0
    %382 = vmatpush2.msra.mxu0 0.0
    %383 = vmatprep.subr.mxu0 0.0
    %384 = vmatpush2.msra.mxu0 0.0
    %385 = vmatprep.subr.mxu0 0.0
    %386 = vmatpush2.msra.mxu0 0.0
    %387 = vmatprep.mubr.f32.mxu0 0.0
    %388 = vmatmul.mubr.f32.gmra.mxu0 %v130
    %v389 = vpop.f32.mrf.mxu0
    %v390 = vadd.f32 %v245, %v389
    %v391 = vpop.f32.mrf.mxu0
    %392 = vmatprep.mubr.f32.mxu0 0.0
    %393 = vmatmul.mubr.f32.gmra.mxu0 %v131
    %v394 = vpop.f32.mrf.mxu0
    %v395 = vadd.f32 %v250, %v394
    %v396 = vpop.f32.mrf.mxu0
    %397 = vmatprep.mubr.f32.mxu0 0.0
    %398 = vmatmul.mubr.f32.gmra.mxu0 %v132
    %v399 = vpop.f32.mrf.mxu0
    %v400 = vadd.f32 %v255, %v399
    %v401 = vpop.f32.mrf.mxu0
    %402 = vmatprep.mubr.f32.mxu0 0.0
    %403 = vmatmul.mubr.f32.gmra.mxu0 %v133
    %v404 = vpop.f32.mrf.mxu0
    %v405 = vadd.f32 %v260, %v404
    %v406 = vpop.f32.mrf.mxu0
    %407 = vmatprep.mubr.f32.mxu0 0.0
    %408 = vmatmul.mubr.f32.gmra.mxu0 %v134
    %v409 = vpop.f32.mrf.mxu0
    %v410 = vadd.f32 %v265, %v409
    %v411 = vpop.f32.mrf.mxu0
    %412 = vmatprep.mubr.f32.mxu0 0.0
    %413 = vmatmul.mubr.f32.gmra.mxu0 %v135
    %v414 = vpop.f32.mrf.mxu0
    %v415 = vadd.f32 %v270, %v414
    %v416 = vpop.f32.mrf.mxu0
    %417 = vmatprep.mubr.f32.mxu0 0.0
    %418 = vmatmul.mubr.f32.gmra.mxu0 %v136
    %v419 = vpop.f32.mrf.mxu0
    %v420 = vadd.f32 %v275, %v419
    %v421 = vpop.f32.mrf.mxu0
    %422 = vmatprep.mubr.f32.mxu0 0.0
    %423 = vmatmul.mubr.f32.gmra.mxu0 %v137
    %v424 = vpop.f32.mrf.mxu0
    %v425 = vadd.f32 %v280, %v424
    %v426 = vpop.f32.mrf.mxu0
    %427 = vmatprep.mubr.f32.mxu0 0.0
    %428 = vmatmul.mubr.f32.gmra.mxu0 %v138
    %v429 = vpop.f32.mrf.mxu0
    %v430 = vadd.f32 %v285, %v429
    %v431 = vpop.f32.mrf.mxu0
    %432 = vmatprep.mubr.f32.mxu0 0.0
    %433 = vmatmul.mubr.f32.gmra.mxu0 %v139
    %v434 = vpop.f32.mrf.mxu0
    %v435 = vadd.f32 %v290, %v434
    %v436 = vpop.f32.mrf.mxu0
    %437 = vmatprep.mubr.f32.mxu0 0.0
    %438 = vmatmul.mubr.f32.gmra.mxu0 %v140
    %v439 = vpop.f32.mrf.mxu0
    %v440 = vadd.f32 %v295, %v439
    %v441 = vpop.f32.mrf.mxu0
    %442 = vmatprep.mubr.f32.mxu0 0.0
    %443 = vmatmul.mubr.f32.gmra.mxu0 %v141
    %v444 = vpop.f32.mrf.mxu0
    %v445 = vadd.f32 %v300, %v444
    %v446 = vpop.f32.mrf.mxu0
    %447 = vmatprep.mubr.f32.mxu0 0.0
    %448 = vmatmul.mubr.f32.gmra.mxu0 %v142
    %v449 = vpop.f32.mrf.mxu0
    %v450 = vadd.f32 %v305, %v449
    %v451 = vpop.f32.mrf.mxu0
    %452 = vmatprep.mubr.f32.mxu0 0.0
    %453 = vmatmul.mubr.f32.gmra.mxu0 %v143
    %v454 = vpop.f32.mrf.mxu0
    %v455 = vadd.f32 %v310, %v454
    %v456 = vpop.f32.mrf.mxu0
    %457 = vmatprep.mubr.f32.mxu0 0.0
    %458 = vmatmul.mubr.f32.gmra.mxu0 %v144
    %v459 = vpop.f32.mrf.mxu0
    %v460 = vadd.f32 %v315, %v459
    %v461 = vpop.f32.mrf.mxu0
    %462 = vmatprep.mubr.f32.mxu0 0.0
    %463 = vmatmul.mubr.f32.gmra.mxu0 %v145
    %v464 = vpop.f32.mrf.mxu0
    %v465 = vadd.f32 %v320, %v464
    %v466 = vpop.f32.mrf.mxu0
    %467 = vdwg.mxu0
    %v468 = vld [vmem:[#allocation5] sm:$0xff]
    %v469 = vld [vmem:[#allocation5 + $0x8] sm:$0xff]
    %v470 = vld [vmem:[#allocation5 + $0x10] sm:$0xff]
    %v471 = vld [vmem:[#allocation5 + $0x18] sm:$0xff]
    %v472 = vld [vmem:[#allocation5 + $0x20] sm:$0xff]
    %v473 = vld [vmem:[#allocation5 + $0x28] sm:$0xff]
    %v474 = vld [vmem:[#allocation5 + $0x30] sm:$0xff]
    %v475 = vld [vmem:[#allocation5 + $0x38] sm:$0xff]
    %v476 = vld [vmem:[#allocation5 + $0x40] sm:$0xff]
    %v477 = vld [vmem:[#allocation5 + $0x48] sm:$0xff]
    %v478 = vld [vmem:[#allocation5 + $0x50] sm:$0xff]
    %v479 = vld [vmem:[#allocation5 + $0x58] sm:$0xff]
    %v480 = vld [vmem:[#allocation5 + $0x60] sm:$0xff]
    %v481 = vld [vmem:[#allocation5 + $0x68] sm:$0xff]
    %v482 = vld [vmem:[#allocation5 + $0x70] sm:$0xff]
    %v483 = vld [vmem:[#allocation5 + $0x78] sm:$0xff]
    %484 = vmatprep.subr.mxu0 0.0
    %485 = vmatpush1.msra.mxu0 %v129
    %486 = vmatprep.subr.mxu0 0.0
    %487 = vmatpush1.msra.mxu0 %v128
    %488 = vmatprep.subr.mxu0 0.0
    %489 = vmatpush1.msra.mxu0 %v127
    %490 = vmatprep.subr.mxu0 0.0
    %491 = vmatpush1.msra.mxu0 %v126
    %492 = vmatprep.subr.mxu0 0.0
    %493 = vmatpush1.msra.mxu0 %v125
    %494 = vmatprep.subr.mxu0 0.0
    %495 = vmatpush1.msra.mxu0 %v124
    %496 = vmatprep.subr.mxu0 0.0
    %497 = vmatpush1.msra.mxu0 %v123
    %498 = vmatprep.subr.mxu0 0.0
    %499 = vmatpush1.msra.mxu0 %v122
    %500 = vmatprep.subr.mxu0 0.0
    %501 = vmatpush1.msra.mxu0 %v121
    %502 = vmatprep.subr.mxu0 0.0
    %503 = vmatpush1.msra.mxu0 %v120
    %504 = vmatprep.subr.mxu0 0.0
    %505 = vmatpush1.msra.mxu0 %v119
    %506 = vmatprep.subr.mxu0 0.0
    %507 = vmatpush1.msra.mxu0 %v118
    %508 = vmatprep.subr.mxu0 0.0
    %509 = vmatpush1.msra.mxu0 %v117
    %510 = vmatprep.subr.mxu0 0.0
    %511 = vmatpush1.msra.mxu0 %v116
    %512 = vmatprep.subr.mxu0 0.0
    %513 = vmatpush1.msra.mxu0 %v115
    %514 = vmatprep.subr.mxu0 0.0
    %515 = vmatpush1.msra.mxu0 %v114
    %516 = vmatprep.subr.mxu0 0.0
    %517 = vmatpush2.msra.mxu0 0.0
    %518 = vmatprep.subr.mxu0 0.0
    %519 = vmatpush2.msra.mxu0 0.0
    %520 = vmatprep.subr.mxu0 0.0
    %521 = vmatpush2.msra.mxu0 0.0
    %522 = vmatprep.subr.mxu0 0.0
    %523 = vmatpush2.msra.mxu0 0.0
    %524 = vmatprep.subr.mxu0 0.0
    %525 = vmatpush2.msra.mxu0 0.0
    %526 = vmatprep.subr.mxu0 0.0
    %527 = vmatpush2.msra.mxu0 0.0
    %528 = vmatprep.subr.mxu0 0.0
    %529 = vmatpush2.msra.mxu0 0.0
    %530 = vmatprep.subr.mxu0 0.0
    %531 = vmatpush2.msra.mxu0 0.0
    %532 = vmatprep.subr.mxu0 0.0
    %533 = vmatpush2.msra.mxu0 0.0
    %534 = vmatprep.subr.mxu0 0.0
    %535 = vmatpush2.msra.mxu0 0.0
    %536 = vmatprep.subr.mxu0 0.0
    %537 = vmatpush2.msra.mxu0 0.0
    %538 = vmatprep.subr.mxu0 0.0
    %539 = vmatpush2.msra.mxu0 0.0
    %540 = vmatprep.subr.mxu0 0.0
    %541 = vmatpush2.msra.mxu0 0.0
    %542 = vmatprep.subr.mxu0 0.0
    %543 = vmatpush2.msra.mxu0 0.0
    %544 = vmatprep.subr.mxu0 0.0
    %545 = vmatpush2.msra.mxu0 0.0
    %546 = vmatprep.subr.mxu0 0.0
    %547 = vmatpush2.msra.mxu0 0.0
    %548 = vmatprep.mubr.f32.mxu0 0.0
    %549 = vmatmul.mubr.f32.gmra.mxu0 %v468
    %v550 = vpop.f32.mrf.mxu0
    %v551 = vadd.f32 0.0, %v550
    %v552 = vpop.f32.mrf.mxu0
    %553 = vmatprep.mubr.f32.mxu0 0.0
    %554 = vmatmul.mubr.f32.gmra.mxu0 %v469
    %v555 = vpop.f32.mrf.mxu0
    %v556 = vadd.f32 0.0, %v555
    %v557 = vpop.f32.mrf.mxu0
    %558 = vmatprep.mubr.f32.mxu0 0.0
    %559 = vmatmul.mubr.f32.gmra.mxu0 %v470
    %v560 = vpop.f32.mrf.mxu0
    %v561 = vadd.f32 0.0, %v560
    %v562 = vpop.f32.mrf.mxu0
    %563 = vmatprep.mubr.f32.mxu0 0.0
    %564 = vmatmul.mubr.f32.gmra.mxu0 %v471
    %v565 = vpop.f32.mrf.mxu0
    %v566 = vadd.f32 0.0, %v565
    %v567 = vpop.f32.mrf.mxu0
    %568 = vmatprep.mubr.f32.mxu0 0.0
    %569 = vmatmul.mubr.f32.gmra.mxu0 %v472
    %v570 = vpop.f32.mrf.mxu0
    %v571 = vadd.f32 0.0, %v570
    %v572 = vpop.f32.mrf.mxu0
    %573 = vmatprep.mubr.f32.mxu0 0.0
    %574 = vmatmul.mubr.f32.gmra.mxu0 %v473
    %v575 = vpop.f32.mrf.mxu0
    %v576 = vadd.f32 0.0, %v575
    %v577 = vpop.f32.mrf.mxu0
    %578 = vmatprep.mubr.f32.mxu0 0.0
    %579 = vmatmul.mubr.f32.gmra.mxu0 %v474
    %v580 = vpop.f32.mrf.mxu0
    %v581 = vadd.f32 0.0, %v580
    %v582 = vpop.f32.mrf.mxu0
    %583 = vmatprep.mubr.f32.mxu0 0.0
    %584 = vmatmul.mubr.f32.gmra.mxu0 %v475
    %v585 = vpop.f32.mrf.mxu0
    %v586 = vadd.f32 0.0, %v585
    %v587 = vpop.f32.mrf.mxu0
    %588 = vmatprep.mubr.f32.mxu0 0.0
    %589 = vmatmul.mubr.f32.gmra.mxu0 %v476
    %v590 = vpop.f32.mrf.mxu0
    %v591 = vadd.f32 0.0, %v590
    %v592 = vpop.f32.mrf.mxu0
    %593 = vmatprep.mubr.f32.mxu0 0.0
    %594 = vmatmul.mubr.f32.gmra.mxu0 %v477
    %v595 = vpop.f32.mrf.mxu0
    %v596 = vadd.f32 0.0, %v595
    %v597 = vpop.f32.mrf.mxu0
    %598 = vmatprep.mubr.f32.mxu0 0.0
    %599 = vmatmul.mubr.f32.gmra.mxu0 %v478
    %v600 = vpop.f32.mrf.mxu0
    %v601 = vadd.f32 0.0, %v600
    %v602 = vpop.f32.mrf.mxu0
    %603 = vmatprep.mubr.f32.mxu0 0.0
    %604 = vmatmul.mubr.f32.gmra.mxu0 %v479
    %v605 = vpop.f32.mrf.mxu0
    %v606 = vadd.f32 0.0, %v605
    %v607 = vpop.f32.mrf.mxu0
    %608 = vmatprep.mubr.f32.mxu0 0.0
    %609 = vmatmul.mubr.f32.gmra.mxu0 %v480
    %v610 = vpop.f32.mrf.mxu0
    %v611 = vadd.f32 0.0, %v610
    %v612 = vpop.f32.mrf.mxu0
    %613 = vmatprep.mubr.f32.mxu0 0.0
    %614 = vmatmul.mubr.f32.gmra.mxu0 %v481
    %v615 = vpop.f32.mrf.mxu0
    %v616 = vadd.f32 0.0, %v615
    %v617 = vpop.f32.mrf.mxu0
    %618 = vmatprep.mubr.f32.mxu0 0.0
    %619 = vmatmul.mubr.f32.gmra.mxu0 %v482
    %v620 = vpop.f32.mrf.mxu0
    %v621 = vadd.f32 0.0, %v620
    %v622 = vpop.f32.mrf.mxu0
    %623 = vmatprep.mubr.f32.mxu0 0.0
    %624 = vmatmul.mubr.f32.gmra.mxu0 %v483
    %v625 = vpop.f32.mrf.mxu0
    %v626 = vadd.f32 0.0, %v625
    %v627 = vpop.f32.mrf.mxu0
    %628 = vdwg.mxu0
    %v629 = vadd.f32 %v390, %v551
    %v630 = vadd.f32 %v395, %v556
    %v631 = vadd.f32 %v400, %v561
    %v632 = vadd.f32 %v405, %v566
    %v633 = vadd.f32 %v410, %v571
    %v634 = vadd.f32 %v415, %v576
    %v635 = vadd.f32 %v420, %v581
    %v636 = vadd.f32 %v425, %v586
    %v637 = vadd.f32 %v430, %v591
    %v638 = vadd.f32 %v435, %v596
    %v639 = vadd.f32 %v440, %v601
    %v640 = vadd.f32 %v445, %v606
    %v641 = vadd.f32 %v450, %v611
    %v642 = vadd.f32 %v455, %v616
    %v643 = vadd.f32 %v460, %v621
    %v644 = vadd.f32 %v465, %v626
    %v645 = vld [vmem:[#allocation2] sm:$0xff]
    %v646 = vld [vmem:[#allocation2 + $0x8] sm:$0xff]
    %v647 = vld [vmem:[#allocation2 + $0x10] sm:$0xff]
    %v648 = vld [vmem:[#allocation2 + $0x18] sm:$0xff]
    %v649 = vld [vmem:[#allocation2 + $0x20] sm:$0xff]
    %v650 = vld [vmem:[#allocation2 + $0x28] sm:$0xff]
    %v651 = vld [vmem:[#allocation2 + $0x30] sm:$0xff]
    %v652 = vld [vmem:[#allocation2 + $0x38] sm:$0xff]
    %v653 = vld [vmem:[#allocation2 + $0x40] sm:$0xff]
    %v654 = vld [vmem:[#allocation2 + $0x48] sm:$0xff]
    %v655 = vld [vmem:[#allocation2 + $0x50] sm:$0xff]
    %v656 = vld [vmem:[#allocation2 + $0x58] sm:$0xff]
    %v657 = vld [vmem:[#allocation2 + $0x60] sm:$0xff]
    %v658 = vld [vmem:[#allocation2 + $0x68] sm:$0xff]
    %v659 = vld [vmem:[#allocation2 + $0x70] sm:$0xff]
    %v660 = vld [vmem:[#allocation2 + $0x78] sm:$0xff]
    %v661 = vadd.f32 %v645, %v629
    %v662 = vadd.f32 %v646, %v630
    %v663 = vadd.f32 %v647, %v631
    %v664 = vadd.f32 %v648, %v632
    %v665 = vadd.f32 %v649, %v633
    %v666 = vadd.f32 %v650, %v634
    %v667 = vadd.f32 %v651, %v635
    %v668 = vadd.f32 %v652, %v636
    %v669 = vadd.f32 %v653, %v637
    %v670 = vadd.f32 %v654, %v638
    %v671 = vadd.f32 %v655, %v639
    %v672 = vadd.f32 %v656, %v640
    %v673 = vadd.f32 %v657, %v641
    %v674 = vadd.f32 %v658, %v642
    %v675 = vadd.f32 %v659, %v643
    %v676 = vadd.f32 %v660, %v644
    %vm677 = vcmask 15360
    %678 = vst.msk [vmem:[#allocation2] sm:$0xff] %vm677, %v661
    %679 = vst.msk [vmem:[#allocation2 + $0x8] sm:$0xff] %vm677, %v662
    %680 = vst.msk [vmem:[#allocation2 + $0x10] sm:$0xff] %vm677, %v663
    %681 = vst.msk [vmem:[#allocation2 + $0x18] sm:$0xff] %vm677, %v664
    %682 = vst.msk [vmem:[#allocation2 + $0x20] sm:$0xff] %vm677, %v665
    %683 = vst.msk [vmem:[#allocation2 + $0x28] sm:$0xff] %vm677, %v666
    %684 = vst.msk [vmem:[#allocation2 + $0x30] sm:$0xff] %vm677, %v667
    %685 = vst.msk [vmem:[#allocation2 + $0x38] sm:$0xff] %vm677, %v668
    %686 = vst.msk [vmem:[#allocation2 + $0x40] sm:$0xff] %vm677, %v669
    %687 = vst.msk [vmem:[#allocation2 + $0x48] sm:$0xff] %vm677, %v670
    %688 = vst.msk [vmem:[#allocation2 + $0x50] sm:$0xff] %vm677, %v671
    %689 = vst.msk [vmem:[#allocation2 + $0x58] sm:$0xff] %vm677, %v672
    %690 = vst.msk [vmem:[#allocation2 + $0x60] sm:$0xff] %vm677, %v673
    %691 = vst.msk [vmem:[#allocation2 + $0x68] sm:$0xff] %vm677, %v674
    %692 = vst.msk [vmem:[#allocation2 + $0x70] sm:$0xff] %vm677, %v675
    %693 = vst.msk [vmem:[#allocation2 + $0x78] sm:$0xff] %vm677, %v676
    %v694 = vld [vmem:[#allocation2] sm:$0xff]
    %v695 = vld [vmem:[#allocation2 + $0x8] sm:$0xff]
    %v696 = vld [vmem:[#allocation2 + $0x10] sm:$0xff]
    %v697 = vld [vmem:[#allocation2 + $0x18] sm:$0xff]
    %v698 = vld [vmem:[#allocation2 + $0x20] sm:$0xff]
    %v699 = vld [vmem:[#allocation2 + $0x28] sm:$0xff]
    %v700 = vld [vmem:[#allocation2 + $0x30] sm:$0xff]
    %v701 = vld [vmem:[#allocation2 + $0x38] sm:$0xff]
    %v702 = vld [vmem:[#allocation2 + $0x40] sm:$0xff]
    %v703 = vld [vmem:[#allocation2 + $0x48] sm:$0xff]
    %v704 = vld [vmem:[#allocation2 + $0x50] sm:$0xff]
    %v705 = vld [vmem:[#allocation2 + $0x58] sm:$0xff]
    %v706 = vld [vmem:[#allocation2 + $0x60] sm:$0xff]
    %v707 = vld [vmem:[#allocation2 + $0x68] sm:$0xff]
    %v708 = vld [vmem:[#allocation2 + $0x70] sm:$0xff]
    %v709 = vld [vmem:[#allocation2 + $0x78] sm:$0xff]
    %710 = vst.msk [vmem:[%s4] sm:$0xff] %vm677, %v694
    %711 = vst.msk [vmem:[%s4 + $0x8] sm:$0xff] %vm677, %v695
    %712 = vst.msk [vmem:[%s4 + $0x10] sm:$0xff] %vm677, %v696
    %713 = vst.msk [vmem:[%s4 + $0x18] sm:$0xff] %vm677, %v697
    %714 = vst.msk [vmem:[%s4 + $0x20] sm:$0xff] %vm677, %v698
    %715 = vst.msk [vmem:[%s4 + $0x28] sm:$0xff] %vm677, %v699
    %716 = vst.msk [vmem:[%s4 + $0x30] sm:$0xff] %vm677, %v700
    %717 = vst.msk [vmem:[%s4 + $0x38] sm:$0xff] %vm677, %v701
    %718 = vst.msk [vmem:[%s4 + $0x40] sm:$0xff] %vm677, %v702
    %719 = vst.msk [vmem:[%s4 + $0x48] sm:$0xff] %vm677, %v703
    %720 = vst.msk [vmem:[%s4 + $0x50] sm:$0xff] %vm677, %v704
    %721 = vst.msk [vmem:[%s4 + $0x58] sm:$0xff] %vm677, %v705
    %722 = vst.msk [vmem:[%s4 + $0x60] sm:$0xff] %vm677, %v706
    %723 = vst.msk [vmem:[%s4 + $0x68] sm:$0xff] %vm677, %v707
    %724 = vst.msk [vmem:[%s4 + $0x70] sm:$0xff] %vm677, %v708
    %725 = vst.msk [vmem:[%s4 + $0x78] sm:$0xff] %vm677, %v709
    // Predicated region
    $region30: #{tpu_custom_call.1} parent=1 // pred_check
      _
    $region31: #{tpu_custom_call.1} parent=1 // pred_check_branch
      %727 = sbr.rel (0) target = $region33
    $region32: #{tpu_custom_call.1} parent=1 // pred_region
      _
    $region33: #{tpu_custom_call.1} parent=1 // pred_fallthru
      _
    // Predicated region
    $region34: #{tpu_custom_call.1} parent=1 // pred_check
      _
    $region35: #{tpu_custom_call.1} parent=1 // pred_check_branch
      %729 = sbr.rel (0) target = $region37
    $region36: #{tpu_custom_call.1} parent=1 // pred_region
      _
    $region37: #{tpu_custom_call.1} parent=1 // pred_fallthru
      _
    %730 = vsyncpa [#allocation4], 1
    %731 = vsyncpa [#allocation6], 1

</llo_original>
